<compile_context>
chip_gen: v7x
topology: tpu7x:2x2x1
jax: 0.10.0
libtpu: 0.0.40
codegen_flags: <defaults>
</compile_context>

<pallas_src>
import functools

import jax
import jax.numpy as jnp
import numpy as np
from jax.experimental import pallas as pl
from jax.experimental.pallas import tpu as pltpu


def _elu(x):
    """ELU (alpha=1).  Safe-where form: the exp never sees large positive inputs,
    so a future custom VJP won't produce inf->NaN gradients."""
    pos = x > 0
    neg = jnp.where(pos, jnp.zeros_like(x), x)
    return jnp.where(pos, x, jnp.exp(neg) - 1.0)


def _default_elementwise_dtype():
    """bf16 elementwise on chips whose VPU/EUP support bf16 (v6e / v7x);
    f32 on v5e and older (no bf16 VALU/EUP there)."""
    try:
        kind = jax.devices()[0].device_kind.lower()
    except Exception:
        return jnp.float32
    if any(t in kind for t in ("v2", "v3", "v4", "v5")):
        return jnp.float32
    return jnp.bfloat16


# ------------------------------ kernel ------------------------------


def actor_kernel(s_ref,
                 w13_ref, b13_ref,
                 w24_ref, b24_ref,
                 wh_ref, bh_ref,
                 mask_ref,
                 out_ref,
                 *, ew_dtype):
    cdt = w13_ref.dtype        # matmul operand dtype (bf16 by default)
    ew = ew_dtype              # elementwise dtype (bf16 on v6e/v7x, f32 on v5e)

    s = s_ref[...].astype(cdt)

    # layer 1, both branches at once: (tm, in) @ (in, 2H), f32 accumulation
    h1 = jnp.dot(s, w13_ref[...], preferred_element_type=jnp.float32) + b13_ref[...]
    h1 = _elu(h1.astype(ew)).astype(cdt)

    # layer 2, block-diagonal: (tm, 2H) @ (2H, 2H)
    h2 = jnp.dot(h1, w24_ref[...], preferred_element_type=jnp.float32) + b24_ref[...]
    h2 = _elu(h2.astype(ew)).astype(cdt)

    # heads, block-diagonal + lane padding: (tm, 2H) @ (2H, 2P)
    y = jnp.dot(h2, wh_ref[...], preferred_element_type=jnp.float32) + bh_ref[...]
    y = y.astype(ew)

    # precomputed column mask (hoisted out of the kernel body): 1.0 on the mean
    # half -> ELU, 0.0 on the log_std half -> clamp(-20, 2).
    is_mean = mask_ref[...] > 0.0
    out = jnp.where(is_mean, _elu(y), jnp.clip(y, -20.0, 2.0))
    out_ref[...] = out.astype(out_ref.dtype)


# ------------------------- parameter packing ------------------------


def pack_params(p, *, compute_dtype=jnp.bfloat16):
    """Fuse the 6 Linear layers into 3 wide / block-diagonal matrices.

    Weights are stored transposed, (in_features, out_features), so the kernel
    computes y = x @ W + b.  Matmul weights are cast to `compute_dtype`
    (pass jnp.float32 for strict PyTorch parity); biases stay f32 (added after
    f32 accumulation)."""
    in_dim, H = p["w1"].shape
    out_dim = p["wm"].shape[1]
    # pad each head to P lanes so the combined output is 2P (a multiple of 128)
    P = max(64, 64 * ((out_dim + 63) // 64))

    w13 = jnp.concatenate([p["w1"], p["w3"]], axis=1)            # (in, 2H)
    b13 = jnp.concatenate([p["b1"], p["b3"]], axis=1)            # (1, 2H)

    z = jnp.zeros((H, H), jnp.float32)
    w24 = jnp.block([[p["w2"], z], [z, p["w4"]]])                # (2H, 2H)
    b24 = jnp.concatenate([p["b2"], p["b4"]], axis=1)            # (1, 2H)

    wh = jnp.zeros((2 * H, 2 * P), jnp.float32)
    wh = wh.at[:H, :out_dim].set(p["wm"])                        # mean head
    wh = wh.at[H:, P:P + out_dim].set(p["wls"])                  # log_std head
    bh = jnp.zeros((1, 2 * P), jnp.float32)
    bh = bh.at[:, :out_dim].set(p["bm"])
    bh = bh.at[:, P:P + out_dim].set(p["bls"])

    # column mask: 1.0 -> mean (ELU) columns, 0.0 -> log_std (clamp) columns
    mask = jnp.zeros((1, 2 * P), jnp.float32).at[:, :P].set(1.0)

    return dict(
        w13=w13.astype(compute_dtype), b13=b13,
        w24=w24.astype(compute_dtype), b24=b24,
        wh=wh.astype(compute_dtype), bh=bh,
        mask=mask,
        out_dim=out_dim, half=P,
    )


# --------------------------- tiling helpers --------------------------


def _derive_batch_tile(B, max_tile):
    """Single grid step for small B; otherwise slabs <= max_tile rows with an
    EVEN number of grid steps (v7x: 2 TensorCores split a 'parallel' axis)."""
    if B <= max_tile:
        return B
    n = -(-B // max_tile)
    if n % 2 == 1:
        n += 1                         # even step count for megacore balance
    tile = -(-B // n)
    tile = -(-tile // 8) * 8           # sublane-aligned
    return tile


def _vmem_limit_bytes(batch_tile, in_dim, h2, n_out, weight_bytes):
    """Explicit scoped-VMEM budget: double-buffered in/out tiles + three f32
    (tile x 2H / 2P) intermediates + resident weights, with 4x headroom,
    clamped under v7x's 64 MiB physical VMEM."""
    io = 2 * batch_tile * in_dim * 4 + 2 * batch_tile * n_out * 4
    inter = 3 * batch_tile * max(h2, n_out) * 4
    total = io + inter + weight_bytes
    return int(min(max(4 * total, 16 << 20), 56 << 20))


# ------------------------------ wrapper ------------------------------


def actor_forward(s, packed, *, batch_tile=None, max_batch_tile=512,
                  elementwise_dtype=None, out_dtype=jnp.float32):
    """s: (B, input_size) float32.  packed: output of pack_params.

    Returns (mean, log_std), each (B, out_dim) in `out_dtype`.
    For very large streaming batches, out_dtype=jnp.bfloat16 halves the padded
    (B, 2P) HBM writeback (irrelevant at small B)."""
    B, in_dim = s.shape
    P = packed["half"]
    out_dim = packed["out_dim"]
    n_out = 2 * P
    h2 = packed["w13"].shape[1]

    if elementwise_dtype is None:
        elementwise_dtype = _default_elementwise_dtype()

    if batch_tile is None:
        batch_tile = _derive_batch_tile(B, max_batch_tile)
    n_steps = -(-B // batch_tile)
    padded_B = n_steps * batch_tile
    if padded_B != B:
        # explicit zero pad of the last partial slab (row-independent work; do
        # not rely on implicit OOB block padding)
        s = jnp.pad(s, ((0, padded_B - B), (0, 0)))

    weight_arrays = [packed[k] for k in ("w13", "b13", "w24", "b24", "wh", "bh", "mask")]
    weight_bytes = int(sum(a.size * a.dtype.itemsize for a in weight_arrays))

    vmem_limit = _vmem_limit_bytes(batch_tile, in_dim, h2, n_out, weight_bytes)

    out_itemsize = jnp.dtype(out_dtype).itemsize
    cost = pl.CostEstimate(
        flops=2 * B * (in_dim * h2 + h2 * h2 + h2 * n_out),
        transcendentals=B * (h2 + h2 + P),
        bytes_accessed=B * in_dim * 4 + B * n_out * out_itemsize + weight_bytes,
    )

    full2d = lambda arr: pl.BlockSpec(arr.shape, lambda i: (0, 0))

    out = pl.pallas_call(
        functools.partial(actor_kernel, ew_dtype=elementwise_dtype),
        out_shape=jax.ShapeDtypeStruct((padded_B, n_out), out_dtype),
        grid_spec=pltpu.PrefetchScalarGridSpec(
            num_scalar_prefetch=0,
            grid=(n_steps,),
            in_specs=[
                pl.BlockSpec((batch_tile, in_dim), lambda i: (i, 0)),   # s tile
                full2d(packed["w13"]), full2d(packed["b13"]),
                full2d(packed["w24"]), full2d(packed["b24"]),
                full2d(packed["wh"]), full2d(packed["bh"]),
                full2d(packed["mask"]),
            ],
            out_specs=pl.BlockSpec((batch_tile, n_out), lambda i: (i, 0)),
        ),
        compiler_params=pltpu.CompilerParams(
            dimension_semantics=("parallel",),
            vmem_limit_bytes=vmem_limit,
        ),
        cost_estimate=cost,
    )(s, *weight_arrays)

    mean = out[:B, :out_dim]
    log_std = out[:B, P:P + out_dim]
    return mean, log_std


# --------------------------- init & reference ------------------------


def init_params(key, input_size, hidden_size, output_size):
    """Deterministic init mirroring nn.Linear defaults (+ the explicit
    uniform(-0.001, 0.001) overrides on mean_linear / log_std_linear).
    Weights stored transposed: (in_features, out_features)."""
    keys = jax.random.split(key, 12)

    def linear(kw, kb, fan_in, fan_out, bound=None):
        if bound is None:
            bound = 1.0 / np.sqrt(fan_in)
        w = jax.random.uniform(kw, (fan_in, fan_out), jnp.float32, -bound, bound)
        b = jax.random.uniform(kb, (1, fan_out), jnp.float32, -bound, bound)
        return w, b

    w1, b1 = linear(keys[0], keys[1], input_size, hidden_size)
    w2, b2 = linear(keys[2], keys[3], hidden_size, hidden_size)
    w3, b3 = linear(keys[4], keys[5], input_size, hidden_size)
    w4, b4 = linear(keys[6], keys[7], hidden_size, hidden_size)
    wm, bm = linear(keys[8], keys[9], hidden_size, output_size, bound=0.001)
    wls, bls = linear(keys[10], keys[11], hidden_size, output_size, bound=0.001)

    return dict(w1=w1, b1=b1, w2=w2, b2=b2, w3=w3, b3=b3, w4=w4, b4=b4,
                wm=wm, bm=bm, wls=wls, bls=bls)


def actor_reference(s, p, compute_dtype=jnp.bfloat16, ew_dtype=jnp.float32):
    """Pure-JAX reference on the ORIGINAL (unfused) parameters, using the same
    numerics as the kernel (compute_dtype matmul operands, f32 accumulation,
    ew_dtype elementwise).  Independently checks packing + kernel math."""
    def mm(x, w):
        return jnp.dot(x.astype(compute_dtype), w.astype(compute_dtype),
                       preferred_element_type=jnp.float32)

    def act(x):
        return _elu(x.astype(ew_dtype))

    x1 = act(mm(s, p["w1"]) + p["b1"])
    x1 = act(mm(x1, p["w2"]) + p["b2"])
    x2 = act(mm(s, p["w3"]) + p["b3"])
    x2 = act(mm(x2, p["w4"]) + p["b4"])
    mean = _elu((mm(x1, p["wm"]) + p["bm"]).astype(ew_dtype)).astype(jnp.float32)
    log_std = jnp.clip((mm(x2, p["wls"]) + p["bls"]).astype(ew_dtype),
                       -20.0, 2.0).astype(jnp.float32)
    return mean, log_std


# -------------------------------- main -------------------------------


if __name__ == "__main__":
    key = jax.random.PRNGKey(0)
    k_param, k_in1, k_in2 = jax.random.split(key, 3)

    batch, input_size, hidden_size, output_size = 16, 32, 64, 1

    params = init_params(k_param, input_size, hidden_size, output_size)
    packed = pack_params(params)
    ew = _default_elementwise_dtype()

    # small batch: single grid step (overhead-bound regime)
    s = jax.random.normal(k_in1, (batch, input_size), dtype=jnp.float32)
    mean, log_std = actor_forward(s, packed, elementwise_dtype=ew)
    jax.block_until_ready((mean, log_std))

    mean_ref, log_std_ref = actor_reference(s, params, ew_dtype=ew)
    np.testing.assert_allclose(np.asarray(mean), np.asarray(mean_ref),
                               rtol=1e-3, atol=2e-4)
    np.testing.assert_allclose(np.asarray(log_std), np.asarray(log_std_ref),
                               rtol=1e-3, atol=2e-4)

    # larger streaming batch: exercises tiling, even grid split, explicit pad
    s2 = jax.random.normal(k_in2, (600, input_size), dtype=jnp.float32)
    mean2, log_std2 = actor_forward(s2, packed, elementwise_dtype=ew)
    jax.block_until_ready((mean2, log_std2))

    mean2_ref, log_std2_ref = actor_reference(s2, params, ew_dtype=ew)
    np.testing.assert_allclose(np.asarray(mean2), np.asarray(mean2_ref),
                               rtol=1e-3, atol=2e-4)
    np.testing.assert_allclose(np.asarray(log_std2), np.asarray(log_std2_ref),
                               rtol=1e-3, atol=2e-4)

    print("KERNEL_OK")
</pallas_src>

<mosaic_0001>
module attributes {stable_mosaic.version = 11 : i64} {
  func.func @actor_kernel(%arg0: i32, %arg1: memref<16x32xf32, #tpu.memory_space<vmem>>, %arg2: memref<32x128xbf16, #tpu.memory_space<vmem>>, %arg3: memref<1x128xf32, #tpu.memory_space<vmem>>, %arg4: memref<128x128xbf16, #tpu.memory_space<vmem>>, %arg5: memref<1x128xf32, #tpu.memory_space<vmem>>, %arg6: memref<128x128xbf16, #tpu.memory_space<vmem>>, %arg7: memref<1x128xf32, #tpu.memory_space<vmem>>, %arg8: memref<1x128xf32, #tpu.memory_space<vmem>>, %arg9: memref<16x128xf32, #tpu.memory_space<vmem>>) attributes {dimension_semantics = [#tpu.dimension_semantics<parallel>], iteration_bounds = array<i64: 1>, scalar_prefetch = 0 : i64, scratch_operands = 0 : i64, tpu.core_type = #tpu.core_type<tc>, window_params = [{transform_indices = @transform_0, window_bounds = array<i64: 16, 32>}, {pipeline_mode = #tpu.pipeline_mode<synchronous>, transform_indices = @transform_1, window_bounds = array<i64: 32, 128>}, {pipeline_mode = #tpu.pipeline_mode<synchronous>, transform_indices = @transform_2, window_bounds = array<i64: 1, 128>}, {pipeline_mode = #tpu.pipeline_mode<synchronous>, transform_indices = @transform_3, window_bounds = array<i64: 128, 128>}, {pipeline_mode = #tpu.pipeline_mode<synchronous>, transform_indices = @transform_4, window_bounds = array<i64: 1, 128>}, {pipeline_mode = #tpu.pipeline_mode<synchronous>, transform_indices = @transform_5, window_bounds = array<i64: 128, 128>}, {pipeline_mode = #tpu.pipeline_mode<synchronous>, transform_indices = @transform_6, window_bounds = array<i64: 1, 128>}, {pipeline_mode = #tpu.pipeline_mode<synchronous>, transform_indices = @transform_7, window_bounds = array<i64: 1, 128>}, {transform_indices = @transform_8, window_bounds = array<i64: 16, 128>}]} {
    %c0 = arith.constant 0 : index
    %c0_0 = arith.constant 0 : index
    %0 = vector.load %arg1[%c0, %c0_0] : memref<16x32xf32, #tpu.memory_space<vmem>>, vector<16x32xf32>
    %1 = arith.truncf %0 : vector<16x32xf32> to vector<16x32xbf16>
    %c0_1 = arith.constant 0 : index
    %c0_2 = arith.constant 0 : index
    %2 = vector.load %arg2[%c0_1, %c0_2] : memref<32x128xbf16, #tpu.memory_space<vmem>>, vector<32x128xbf16>
    %cst = arith.constant dense<0.000000e+00> : vector<16x128xf32>
    %3 = tpu.matmul %1, %2, %cst {dimension_numbers = #tpu.dot_dimension_numbers<[1], [0], [0], [1], [0, 0, 1, 1], [], []>} : vector<16x32xbf16>, vector<32x128xbf16>, vector<16x128xf32> -> vector<16x128xf32>
    %c0_3 = arith.constant 0 : index
    %c0_4 = arith.constant 0 : index
    %4 = vector.load %arg3[%c0_3, %c0_4] : memref<1x128xf32, #tpu.memory_space<vmem>>, vector<1x128xf32>
    %5 = vector.broadcast %4 : vector<1x128xf32> to vector<16x128xf32>
    %6 = arith.addf %3, %5 : vector<16x128xf32>
    %7 = arith.truncf %6 : vector<16x128xf32> to vector<16x128xbf16>
    %cst_5 = arith.constant 0.000000e+00 : bf16
    %8 = vector.broadcast %cst_5 : bf16 to vector<16x128xbf16>
    %9 = arith.cmpf ogt, %7, %8 : vector<16x128xbf16>
    %cst_6 = arith.constant 0.000000e+00 : bf16
    %10 = vector.broadcast %cst_6 : bf16 to vector<16x128xbf16>
    %11 = arith.select %9, %10, %7 : vector<16x128xi1>, vector<16x128xbf16>
    %12 = math.exp %11 : vector<16x128xbf16>
    %cst_7 = arith.constant 1.000000e+00 : bf16
    %13 = vector.broadcast %cst_7 : bf16 to vector<16x128xbf16>
    %14 = arith.subf %12, %13 : vector<16x128xbf16>
    %15 = arith.select %9, %7, %14 : vector<16x128xi1>, vector<16x128xbf16>
    %c0_8 = arith.constant 0 : index
    %c0_9 = arith.constant 0 : index
    %16 = vector.load %arg4[%c0_8, %c0_9] : memref<128x128xbf16, #tpu.memory_space<vmem>>, vector<128x128xbf16>
    %cst_10 = arith.constant dense<0.000000e+00> : vector<16x128xf32>
    %17 = tpu.matmul %15, %16, %cst_10 {dimension_numbers = #tpu.dot_dimension_numbers<[1], [0], [0], [1], [0, 0, 1, 1], [], []>} : vector<16x128xbf16>, vector<128x128xbf16>, vector<16x128xf32> -> vector<16x128xf32>
    %c0_11 = arith.constant 0 : index
    %c0_12 = arith.constant 0 : index
    %18 = vector.load %arg5[%c0_11, %c0_12] : memref<1x128xf32, #tpu.memory_space<vmem>>, vector<1x128xf32>
    %19 = vector.broadcast %18 : vector<1x128xf32> to vector<16x128xf32>
    %20 = arith.addf %17, %19 : vector<16x128xf32>
    %21 = arith.truncf %20 : vector<16x128xf32> to vector<16x128xbf16>
    %cst_13 = arith.constant 0.000000e+00 : bf16
    %22 = vector.broadcast %cst_13 : bf16 to vector<16x128xbf16>
    %23 = arith.cmpf ogt, %21, %22 : vector<16x128xbf16>
    %cst_14 = arith.constant 0.000000e+00 : bf16
    %24 = vector.broadcast %cst_14 : bf16 to vector<16x128xbf16>
    %25 = arith.select %23, %24, %21 : vector<16x128xi1>, vector<16x128xbf16>
    %26 = math.exp %25 : vector<16x128xbf16>
    %cst_15 = arith.constant 1.000000e+00 : bf16
    %27 = vector.broadcast %cst_15 : bf16 to vector<16x128xbf16>
    %28 = arith.subf %26, %27 : vector<16x128xbf16>
    %29 = arith.select %23, %21, %28 : vector<16x128xi1>, vector<16x128xbf16>
    %c0_16 = arith.constant 0 : index
    %c0_17 = arith.constant 0 : index
    %30 = vector.load %arg6[%c0_16, %c0_17] : memref<128x128xbf16, #tpu.memory_space<vmem>>, vector<128x128xbf16>
    %cst_18 = arith.constant dense<0.000000e+00> : vector<16x128xf32>
    %31 = tpu.matmul %29, %30, %cst_18 {dimension_numbers = #tpu.dot_dimension_numbers<[1], [0], [0], [1], [0, 0, 1, 1], [], []>} : vector<16x128xbf16>, vector<128x128xbf16>, vector<16x128xf32> -> vector<16x128xf32>
    %c0_19 = arith.constant 0 : index
    %c0_20 = arith.constant 0 : index
    %32 = vector.load %arg7[%c0_19, %c0_20] : memref<1x128xf32, #tpu.memory_space<vmem>>, vector<1x128xf32>
    %33 = vector.broadcast %32 : vector<1x128xf32> to vector<16x128xf32>
    %34 = arith.addf %31, %33 : vector<16x128xf32>
    %35 = arith.truncf %34 : vector<16x128xf32> to vector<16x128xbf16>
    %c0_21 = arith.constant 0 : index
    %c0_22 = arith.constant 0 : index
    %36 = vector.load %arg8[%c0_21, %c0_22] : memref<1x128xf32, #tpu.memory_space<vmem>>, vector<1x128xf32>
    %cst_23 = arith.constant 0.000000e+00 : f32
    %37 = vector.broadcast %cst_23 : f32 to vector<1x128xf32>
    %38 = arith.cmpf ogt, %36, %37 : vector<1x128xf32>
    %cst_24 = arith.constant 0.000000e+00 : bf16
    %39 = vector.broadcast %cst_24 : bf16 to vector<16x128xbf16>
    %40 = arith.cmpf ogt, %35, %39 : vector<16x128xbf16>
    %cst_25 = arith.constant 0.000000e+00 : bf16
    %41 = vector.broadcast %cst_25 : bf16 to vector<16x128xbf16>
    %42 = arith.select %40, %41, %35 : vector<16x128xi1>, vector<16x128xbf16>
    %43 = math.exp %42 : vector<16x128xbf16>
    %cst_26 = arith.constant 1.000000e+00 : bf16
    %44 = vector.broadcast %cst_26 : bf16 to vector<16x128xbf16>
    %45 = arith.subf %43, %44 : vector<16x128xbf16>
    %46 = arith.select %40, %35, %45 : vector<16x128xi1>, vector<16x128xbf16>
    %cst_27 = arith.constant -2.000000e+01 : f32
    %cst_28 = arith.constant 2.000000e+00 : f32
    %47 = arith.truncf %cst_27 : f32 to bf16
    %48 = vector.broadcast %47 : bf16 to vector<16x128xbf16>
    %49 = arith.maximumf %48, %35 : vector<16x128xbf16>
    %50 = arith.truncf %cst_28 : f32 to bf16
    %51 = vector.broadcast %50 : bf16 to vector<16x128xbf16>
    %52 = arith.minimumf %51, %49 : vector<16x128xbf16>
    %53 = vector.shape_cast %38 : vector<1x128xi1> to vector<1x128xi1>
    %54 = vector.broadcast %53 : vector<1x128xi1> to vector<16x128xi1>
    %55 = arith.select %54, %46, %52 : vector<16x128xi1>, vector<16x128xbf16>
    %56 = arith.extf %55 : vector<16x128xbf16> to vector<16x128xf32>
    %c0_29 = arith.constant 0 : index
    %c0_30 = arith.constant 0 : index
    %57 = vector.load %arg9[%c0_29, %c0_30] : memref<16x128xf32, #tpu.memory_space<vmem>>, vector<16x128xf32>
    tpu.vector_store %arg9[%c0_29, %c0_30], %56 {strides = array<i32>} : memref<16x128xf32, #tpu.memory_space<vmem>>, vector<16x128xf32>,
    return
  }
  func.func @transform_0(%arg0: i32) -> (i32, i32) {
    %c0_i32 = arith.constant 0 : i32
    %c0_i32_0 = arith.constant 0 : i32
    return %arg0, %c0_i32 : i32, i32
  }
  func.func @transform_1(%arg0: i32) -> (i32, i32) {
    %c0_i32 = arith.constant 0 : i32
    %c0_i32_0 = arith.constant 0 : i32
    %c0_i32_1 = arith.constant 0 : i32
    return %c0_i32, %c0_i32_0 : i32, i32
  }
  func.func @transform_2(%arg0: i32) -> (i32, i32) {
    %c0_i32 = arith.constant 0 : i32
    %c0_i32_0 = arith.constant 0 : i32
    %c0_i32_1 = arith.constant 0 : i32
    return %c0_i32, %c0_i32_0 : i32, i32
  }
  func.func @transform_3(%arg0: i32) -> (i32, i32) {
    %c0_i32 = arith.constant 0 : i32
    %c0_i32_0 = arith.constant 0 : i32
    %c0_i32_1 = arith.constant 0 : i32
    return %c0_i32, %c0_i32_0 : i32, i32
  }
  func.func @transform_4(%arg0: i32) -> (i32, i32) {
    %c0_i32 = arith.constant 0 : i32
    %c0_i32_0 = arith.constant 0 : i32
    %c0_i32_1 = arith.constant 0 : i32
    return %c0_i32, %c0_i32_0 : i32, i32
  }
  func.func @transform_5(%arg0: i32) -> (i32, i32) {
    %c0_i32 = arith.constant 0 : i32
    %c0_i32_0 = arith.constant 0 : i32
    %c0_i32_1 = arith.constant 0 : i32
    return %c0_i32, %c0_i32_0 : i32, i32
  }
  func.func @transform_6(%arg0: i32) -> (i32, i32) {
    %c0_i32 = arith.constant 0 : i32
    %c0_i32_0 = arith.constant 0 : i32
    %c0_i32_1 = arith.constant 0 : i32
    return %c0_i32, %c0_i32_0 : i32, i32
  }
  func.func @transform_7(%arg0: i32) -> (i32, i32) {
    %c0_i32 = arith.constant 0 : i32
    %c0_i32_0 = arith.constant 0 : i32
    %c0_i32_1 = arith.constant 0 : i32
    return %c0_i32, %c0_i32_0 : i32, i32
  }
  func.func @transform_8(%arg0: i32) -> (i32, i32) {
    %c0_i32 = arith.constant 0 : i32
    %c0_i32_0 = arith.constant 0 : i32
    return %arg0, %c0_i32 : i32, i32
  }
}

</mosaic_0001>

<llo_original>
// kernel: tpu_custom_call.1
$region0: #{tpu_custom_call.1}
  #allocation0 [shape = 'u32[]', space=smem, size = 0x4, offset = 0x4, fixed_abs, tag = 'smem constant byte address 0x4 - core index']
  #allocation1 [shape = 'u32[144,128]{1,0:T(1,128)}', space=vmem, size = 0x12000, scoped, tag = 'internal scratch']
  %s0 = inlined_call_operand.hbm [shape: f32[16,32], index: 0, kind: input, shape index: {}]
  %s1 = inlined_call_operand.hbm [shape: bf16[32,128], index: 1, kind: input, shape index: {}]
  %s2 = inlined_call_operand.vmem [shape: f32[1,128], index: 2, kind: input, shape index: {}]
  %s3 = inlined_call_operand.hbm [shape: bf16[128,128], index: 3, kind: input, shape index: {}]
  %s4 = inlined_call_operand.vmem [shape: f32[1,128], index: 4, kind: input, shape index: {}]
  %s5 = inlined_call_operand.hbm [shape: bf16[128,128], index: 5, kind: input, shape index: {}]
  %s6 = inlined_call_operand.vmem [shape: f32[1,128], index: 6, kind: input, shape index: {}]
  %s7 = inlined_call_operand.vmem [shape: f32[1,128], index: 7, kind: input, shape index: {}]
  %s8 = inlined_call_operand.hbm [shape: f32[16,128], index: 8, kind: output, shape index: {}]
  %s9 = sld [smem:[#allocation0]]
  $region58: #{tpu_custom_call.1} parent=0
    _
  %s11 = ssub.s32 1, %s9
  %s12 = scalar_select 0, %s11, %s9
  $region1: #{tpu_custom_call.1} parent=0
    #allocation2 [shape = 'u8[8192]{0}', space=vmem, size = 0x2000, scoped, tag = 'input window, operand 0, single buffered']
    #allocation3 [shape = 's32[1]{0}', space=sflag, size = 0x4, scoped, tag = 'scoped memory for tpu_custom_call.1']
    #allocation4 [shape = 's32[1]{0}', space=sflag, size = 0x4, scoped, tag = 'scoped memory for tpu_custom_call.1']
    #allocation5 [shape = 'u8[8192]{0}', space=vmem, size = 0x2000, scoped, tag = 'input window, operand 1, single buffered']
    #allocation6 [shape = 's32[1]{0}', space=sflag, size = 0x4, scoped, tag = 'scoped memory for tpu_custom_call.1']
    #allocation7 [shape = 'u8[32768]{0}', space=vmem, size = 0x8000, scoped, tag = 'input window, operand 3, single buffered']
    #allocation8 [shape = 'u8[32768]{0}', space=vmem, size = 0x8000, scoped, tag = 'input window, operand 5, single buffered']
    #allocation9 [shape = 's32[1]{0}', space=sflag, size = 0x4, scoped, tag = 'scoped memory for tpu_custom_call.1']
    #allocation10 [shape = 'u8[8192]{0}', space=vmem, size = 0x2000, scoped, tag = 'output window, operand 0, single buffered']
    %13 = vsyncpa [#allocation3], 0
    %14 = vsyncpa [#allocation6], 0
    %15 = vsyncpa [#allocation9], 0
    %16 = vsyncpa [#allocation4], 0
    // Predicated region
    $region2: #{tpu_custom_call.1} parent=1 // pred_check
      _
    $region3: #{tpu_custom_call.1} parent=1 // pred_check_branch
      %18 = sbr.rel (0) target = $region5
    $region4: #{tpu_custom_call.1} parent=1 // pred_region
      %s20 = ssub.s32 256, 256
      %21 = vsyncadd [#allocation3], %s20
      %s22 = sshll.u32 [#allocation2], 4
      %s23 = int_to_ptr.vmem [resolvable:$true] %s22
      %28 = dma.hbm_to_vmem [thread:$0]  %s0, 256, %s23, [#allocation3], 128, 128, 8
    $region5: #{tpu_custom_call.1} parent=1 // pred_fallthru
      _
    // Predicated region
    $region6: #{tpu_custom_call.1} parent=1 // pred_check
      _
    $region7: #{tpu_custom_call.1} parent=1 // pred_check_branch
      %30 = sbr.rel (0) target = $region9
    $region8: #{tpu_custom_call.1} parent=1 // pred_region
      %s32 = ssub.s32 256, 256
      %33 = vsyncadd [#allocation6], %s32
      %s34 = sshll.u32 [#allocation5], 4
      %s35 = int_to_ptr.vmem [resolvable:$true] %s34
      %40 = dma.hbm_to_vmem [thread:$0]  %s1, 256, %s35, [#allocation6], 64, 64, 4
    $region9: #{tpu_custom_call.1} parent=1 // pred_fallthru
      _
    // Predicated region
    $region10: #{tpu_custom_call.1} parent=1 // pred_check
      _
    $region11: #{tpu_custom_call.1} parent=1 // pred_check_branch
      %42 = sbr.rel (0) target = $region13
    $region12: #{tpu_custom_call.1} parent=1 // pred_region
      _
    $region13: #{tpu_custom_call.1} parent=1 // pred_fallthru
      _
    // Predicated region
    $region14: #{tpu_custom_call.1} parent=1 // pred_check
      _
    $region15: #{tpu_custom_call.1} parent=1 // pred_check_branch
      %44 = sbr.rel (0) target = $region17
    $region16: #{tpu_custom_call.1} parent=1 // pred_region
      %s46 = ssub.s32 1024, 1024
      %47 = vsyncadd [#allocation6], %s46
      %s48 = sshll.u32 [#allocation7], 4
      %s49 = int_to_ptr.vmem [resolvable:$true] %s48
      %54 = dma.hbm_to_vmem [thread:$0]  %s3, 1024, %s49, [#allocation6], 64, 64, 4
    $region17: #{tpu_custom_call.1} parent=1 // pred_fallthru
      _
    // Predicated region
    $region18: #{tpu_custom_call.1} parent=1 // pred_check
      _
    $region19: #{tpu_custom_call.1} parent=1 // pred_check_branch
      %56 = sbr.rel (0) target = $region21
    $region20: #{tpu_custom_call.1} parent=1 // pred_region
      _
    $region21: #{tpu_custom_call.1} parent=1 // pred_fallthru
      _
    // Predicated region
    $region22: #{tpu_custom_call.1} parent=1 // pred_check
      _
    $region23: #{tpu_custom_call.1} parent=1 // pred_check_branch
      %58 = sbr.rel (0) target = $region25
    $region24: #{tpu_custom_call.1} parent=1 // pred_region
      %s60 = ssub.s32 1024, 1024
      %61 = vsyncadd [#allocation9], %s60
      %s62 = sshll.u32 [#allocation8], 4
      %s63 = int_to_ptr.vmem [resolvable:$true] %s62
      %68 = dma.hbm_to_vmem [thread:$0]  %s5, 1024, %s63, [#allocation9], 64, 64, 4
    $region25: #{tpu_custom_call.1} parent=1 // pred_fallthru
      _
    // Predicated region
    $region26: #{tpu_custom_call.1} parent=1 // pred_check
      _
    $region27: #{tpu_custom_call.1} parent=1 // pred_check_branch
      %70 = sbr.rel (0) target = $region29
    $region28: #{tpu_custom_call.1} parent=1 // pred_region
      _
    $region29: #{tpu_custom_call.1} parent=1 // pred_fallthru
      _
    // Predicated region
    $region30: #{tpu_custom_call.1} parent=1 // pred_check
      _
    $region31: #{tpu_custom_call.1} parent=1 // pred_check_branch
      %72 = sbr.rel (0) target = $region33
    $region32: #{tpu_custom_call.1} parent=1 // pred_region
      _
    $region33: #{tpu_custom_call.1} parent=1 // pred_fallthru
      _
    // Predicated region
    $region34: #{tpu_custom_call.1} parent=1 // pred_check
      _
    $region35: #{tpu_custom_call.1} parent=1 // pred_check_branch
      %74 = sbr.rel (0) target = $region37
    $region36: #{tpu_custom_call.1} parent=1 // pred_region
      %75 = dma.done [#allocation3], 256
    $region37: #{tpu_custom_call.1} parent=1 // pred_fallthru
      _
    // Predicated region
    $region38: #{tpu_custom_call.1} parent=1 // pred_check
      _
    $region39: #{tpu_custom_call.1} parent=1 // pred_check_branch
      %77 = sbr.rel (0) target = $region41
    $region40: #{tpu_custom_call.1} parent=1 // pred_region
      %78 = dma.done [#allocation6], 256
    $region41: #{tpu_custom_call.1} parent=1 // pred_fallthru
      _
    // Predicated region
    $region42: #{tpu_custom_call.1} parent=1 // pred_check
      _
    $region43: #{tpu_custom_call.1} parent=1 // pred_check_branch
      %80 = sbr.rel (0) target = $region45
    $region44: #{tpu_custom_call.1} parent=1 // pred_region
      %81 = dma.done [#allocation6], 1024
    $region45: #{tpu_custom_call.1} parent=1 // pred_fallthru
      _
    // Predicated region
    $region46: #{tpu_custom_call.1} parent=1 // pred_check
      _
    $region47: #{tpu_custom_call.1} parent=1 // pred_check_branch
      %83 = sbr.rel (0) target = $region49
    $region48: #{tpu_custom_call.1} parent=1 // pred_region
      %84 = dma.done [#allocation9], 1024
    $region49: #{tpu_custom_call.1} parent=1 // pred_fallthru
      _
    %v91 = vld [vmem:[#allocation2] sm:$0xff]
    %v92 = vld [vmem:[#allocation2 + $0x8] sm:$0xff]
    %v93 = vpack.c.bf16 %v92, %v91
    %v94 = vld [vmem:[#allocation5] sm:$0xf]
    %v95 = vld [vmem:[#allocation5 + $0x4] sm:$0xf]
    %v96 = vld [vmem:[#allocation5 + $0x8] sm:$0xf]
    %v97 = vld [vmem:[#allocation5 + $0xc] sm:$0xf]
    %v98 = vld [vmem:[%s2] sm:$0x1]
    %v100 = vlaneseq
    %v101 = vshrl.u32 %v100, 7
    %v102 = vsub.s32 0, %v101
    %v103 = vrot.slane %v98, %v102
    %v109 = vunpack.c.l.b16 %v94
    %v110 = vunpack.c.l.b16 %v95
    %v111 = vunpack.c.l.b16 %v96
    %v112 = vunpack.c.l.b16 %v97
    %v113 = vpack.c.b16 %v110, %v109
    %v114 = vpack.c.b16 %v112, %v111
    %vm117 = vcmask 261120
    %v119 = vsel %vm117, %v93, 0
    %121 = vmatprep.subr.bf16.mxu0 0
    %122 = vmatpush1.bf16.msra.mxu0 %v113
    %123 = vmatprep.subr.bf16.mxu0 0
    %124 = vmatpush1.bf16.msra.mxu0 %v114
    %125 = vmatprep.subr.bf16.mxu0 0
    %126 = vmatpush1.bf16.msra.mxu0 0
    %127 = vmatprep.subr.bf16.mxu0 0
    %128 = vmatpush1.bf16.msra.mxu0 0
    %129 = vmatprep.subr.bf16.mxu0 0
    %130 = vmatpush1.bf16.msra.mxu0 0
    %131 = vmatprep.subr.bf16.mxu0 0
    %132 = vmatpush1.bf16.msra.mxu0 0
    %133 = vmatprep.subr.bf16.mxu0 0
    %134 = vmatpush1.bf16.msra.mxu0 0
    %135 = vmatprep.subr.bf16.mxu0 0
    %136 = vmatpush1.bf16.msra.mxu0 0
    %137 = vmatprep.subr.bf16.mxu0 0
    %138 = vmatpush1.bf16.msra.mxu0 0
    %139 = vmatprep.subr.bf16.mxu0 0
    %140 = vmatpush1.bf16.msra.mxu0 0
    %141 = vmatprep.subr.bf16.mxu0 0
    %142 = vmatpush1.bf16.msra.mxu0 0
    %143 = vmatprep.subr.bf16.mxu0 0
    %144 = vmatpush1.bf16.msra.mxu0 0
    %145 = vmatprep.subr.bf16.mxu0 0
    %146 = vmatpush1.bf16.msra.mxu0 0
    %147 = vmatprep.subr.bf16.mxu0 0
    %148 = vmatpush1.bf16.msra.mxu0 0
    %149 = vmatprep.subr.bf16.mxu0 0
    %150 = vmatpush1.bf16.msra.mxu0 0
    %151 = vmatprep.subr.bf16.mxu0 0
    %152 = vmatpush1.bf16.msra.mxu0 0
    %153 = vmatprep.mubr.bf16.mxu0 0
    %154 = vmatmul.mubr.bf16.gmra.mrb[0].mxu0 %v119
    %v155 = vpop.f32.mrb[0].mxu0
    %v156 = vadd.f32 %v103, %v155
    %v157 = vpop.f32.mrb[0].mxu0
    %v158 = vpop.f32.mrb[0].mxu0
    %v159 = vadd.f32 %v103, %v158
    %v160 = vpop.f32.mrb[0].mxu0
    %161 = vdwg.mxu0
    %v162 = vpack.c.bf16 %v159, %v156
    %vm163 = vcmp.gt.bf16.partialorder %v162, 0
    %v164 = vsel %vm163, 0, %v162
    %v166 = vmul.bf16 %v164, 1069105081
    %v167 = vpow.bf16.pop %v166
    %v168 = vsub.bf16 %v167, 1065369472
    %v169 = vsel %vm163, %v162, %v168
    %v170 = vld [vmem:[#allocation7] sm:$0xf]
    %v171 = vld [vmem:[#allocation7 + $0x4] sm:$0xf]
    %v172 = vld [vmem:[#allocation7 + $0x8] sm:$0xf]
    %v173 = vld [vmem:[#allocation7 + $0xc] sm:$0xf]
    %v174 = vld [vmem:[#allocation7 + $0x10] sm:$0xf]
    %v175 = vld [vmem:[#allocation7 + $0x14] sm:$0xf]
    %v176 = vld [vmem:[#allocation7 + $0x18] sm:$0xf]
    %v177 = vld [vmem:[#allocation7 + $0x1c] sm:$0xf]
    %v178 = vld [vmem:[#allocation7 + $0x20] sm:$0xf]
    %v179 = vld [vmem:[#allocation7 + $0x24] sm:$0xf]
    %v180 = vld [vmem:[#allocation7 + $0x28] sm:$0xf]
    %v181 = vld [vmem:[#allocation7 + $0x2c] sm:$0xf]
    %v182 = vld [vmem:[#allocation7 + $0x30] sm:$0xf]
    %v183 = vld [vmem:[#allocation7 + $0x34] sm:$0xf]
    %v184 = vld [vmem:[#allocation7 + $0x38] sm:$0xf]
    %v185 = vld [vmem:[#allocation7 + $0x3c] sm:$0xf]
    %v186 = vld [vmem:[%s4] sm:$0x1]
    %v188 = vlaneseq
    %v189 = vshrl.u32 %v188, 7
    %v190 = vsub.s32 0, %v189
    %v191 = vrot.slane %v186, %v190
    %v209 = vunpack.c.l.b16 %v170
    %v210 = vunpack.c.l.b16 %v171
    %v211 = vunpack.c.l.b16 %v172
    %v212 = vunpack.c.l.b16 %v173
    %v213 = vunpack.c.l.b16 %v174
    %v214 = vunpack.c.l.b16 %v175
    %v215 = vunpack.c.l.b16 %v176
    %v216 = vunpack.c.l.b16 %v177
    %v217 = vunpack.c.l.b16 %v178
    %v218 = vunpack.c.l.b16 %v179
    %v219 = vunpack.c.l.b16 %v180
    %v220 = vunpack.c.l.b16 %v181
    %v221 = vunpack.c.l.b16 %v182
    %v222 = vunpack.c.l.b16 %v183
    %v223 = vunpack.c.l.b16 %v184
    %v224 = vunpack.c.l.b16 %v185
    %v225 = vpack.c.b16 %v210, %v209
    %v226 = vpack.c.b16 %v212, %v211
    %v227 = vpack.c.b16 %v214, %v213
    %v228 = vpack.c.b16 %v216, %v215
    %v229 = vpack.c.b16 %v218, %v217
    %v230 = vpack.c.b16 %v220, %v219
    %v231 = vpack.c.b16 %v222, %v221
    %v232 = vpack.c.b16 %v224, %v223
    %241 = vmatprep.subr.bf16.mxu0 0
    %242 = vmatpush1.bf16.msra.mxu0 %v225
    %243 = vmatprep.subr.bf16.mxu0 0
    %244 = vmatpush1.bf16.msra.mxu0 %v226
    %245 = vmatprep.subr.bf16.mxu0 0
    %246 = vmatpush1.bf16.msra.mxu0 %v227
    %247 = vmatprep.subr.bf16.mxu0 0
    %248 = vmatpush1.bf16.msra.mxu0 %v228
    %249 = vmatprep.subr.bf16.mxu0 0
    %250 = vmatpush1.bf16.msra.mxu0 %v229
    %251 = vmatprep.subr.bf16.mxu0 0
    %252 = vmatpush1.bf16.msra.mxu0 %v230
    %253 = vmatprep.subr.bf16.mxu0 0
    %254 = vmatpush1.bf16.msra.mxu0 %v231
    %255 = vmatprep.subr.bf16.mxu0 0
    %256 = vmatpush1.bf16.msra.mxu0 %v232
    %257 = vmatprep.subr.bf16.mxu0 0
    %258 = vmatpush1.bf16.msra.mxu0 0
    %259 = vmatprep.subr.bf16.mxu0 0
    %260 = vmatpush1.bf16.msra.mxu0 0
    %261 = vmatprep.subr.bf16.mxu0 0
    %262 = vmatpush1.bf16.msra.mxu0 0
    %263 = vmatprep.subr.bf16.mxu0 0
    %264 = vmatpush1.bf16.msra.mxu0 0
    %265 = vmatprep.subr.bf16.mxu0 0
    %266 = vmatpush1.bf16.msra.mxu0 0
    %267 = vmatprep.subr.bf16.mxu0 0
    %268 = vmatpush1.bf16.msra.mxu0 0
    %269 = vmatprep.subr.bf16.mxu0 0
    %270 = vmatpush1.bf16.msra.mxu0 0
    %271 = vmatprep.subr.bf16.mxu0 0
    %272 = vmatpush1.bf16.msra.mxu0 0
    %273 = vmatprep.mubr.bf16.mxu0 0
    %274 = vmatmul.mubr.bf16.gmra.mrb[0].mxu0 %v169
    %v275 = vpop.f32.mrb[0].mxu0
    %v276 = vadd.f32 %v191, %v275
    %v277 = vpop.f32.mrb[0].mxu0
    %v278 = vpop.f32.mrb[0].mxu0
    %v279 = vadd.f32 %v191, %v278
    %v280 = vpop.f32.mrb[0].mxu0
    %281 = vdwg.mxu0
    %v282 = vpack.c.bf16 %v279, %v276
    %vm283 = vcmp.gt.bf16.partialorder %v282, 0
    %v284 = vsel %vm283, 0, %v282
    %v286 = vmul.bf16 %v284, 1069105081
    %v287 = vpow.bf16.pop %v286
    %v288 = vsub.bf16 %v287, 1065369472
    %v289 = vsel %vm283, %v282, %v288
    %v290 = vld [vmem:[#allocation8] sm:$0xf]
    %v291 = vld [vmem:[#allocation8 + $0x4] sm:$0xf]
    %v292 = vld [vmem:[#allocation8 + $0x8] sm:$0xf]
    %v293 = vld [vmem:[#allocation8 + $0xc] sm:$0xf]
    %v294 = vld [vmem:[#allocation8 + $0x10] sm:$0xf]
    %v295 = vld [vmem:[#allocation8 + $0x14] sm:$0xf]
    %v296 = vld [vmem:[#allocation8 + $0x18] sm:$0xf]
    %v297 = vld [vmem:[#allocation8 + $0x1c] sm:$0xf]
    %v298 = vld [vmem:[#allocation8 + $0x20] sm:$0xf]
    %v299 = vld [vmem:[#allocation8 + $0x24] sm:$0xf]
    %v300 = vld [vmem:[#allocation8 + $0x28] sm:$0xf]
    %v301 = vld [vmem:[#allocation8 + $0x2c] sm:$0xf]
    %v302 = vld [vmem:[#allocation8 + $0x30] sm:$0xf]
    %v303 = vld [vmem:[#allocation8 + $0x34] sm:$0xf]
    %v304 = vld [vmem:[#allocation8 + $0x38] sm:$0xf]
    %v305 = vld [vmem:[#allocation8 + $0x3c] sm:$0xf]
    %v306 = vld [vmem:[%s6] sm:$0x1]
    %v308 = vlaneseq
    %v309 = vshrl.u32 %v308, 7
    %v310 = vsub.s32 0, %v309
    %v311 = vrot.slane %v306, %v310
    %v329 = vunpack.c.l.b16 %v290
    %v330 = vunpack.c.l.b16 %v291
    %v331 = vunpack.c.l.b16 %v292
    %v332 = vunpack.c.l.b16 %v293
    %v333 = vunpack.c.l.b16 %v294
    %v334 = vunpack.c.l.b16 %v295
    %v335 = vunpack.c.l.b16 %v296
    %v336 = vunpack.c.l.b16 %v297
    %v337 = vunpack.c.l.b16 %v298
    %v338 = vunpack.c.l.b16 %v299
    %v339 = vunpack.c.l.b16 %v300
    %v340 = vunpack.c.l.b16 %v301
    %v341 = vunpack.c.l.b16 %v302
    %v342 = vunpack.c.l.b16 %v303
    %v343 = vunpack.c.l.b16 %v304
    %v344 = vunpack.c.l.b16 %v305
    %v345 = vpack.c.b16 %v330, %v329
    %v346 = vpack.c.b16 %v332, %v331
    %v347 = vpack.c.b16 %v334, %v333
    %v348 = vpack.c.b16 %v336, %v335
    %v349 = vpack.c.b16 %v338, %v337
    %v350 = vpack.c.b16 %v340, %v339
    %v351 = vpack.c.b16 %v342, %v341
    %v352 = vpack.c.b16 %v344, %v343
    %361 = vmatprep.subr.bf16.mxu0 0
    %362 = vmatpush1.bf16.msra.mxu0 %v345
    %363 = vmatprep.subr.bf16.mxu0 0
    %364 = vmatpush1.bf16.msra.mxu0 %v346
    %365 = vmatprep.subr.bf16.mxu0 0
    %366 = vmatpush1.bf16.msra.mxu0 %v347
    %367 = vmatprep.subr.bf16.mxu0 0
    %368 = vmatpush1.bf16.msra.mxu0 %v348
    %369 = vmatprep.subr.bf16.mxu0 0
    %370 = vmatpush1.bf16.msra.mxu0 %v349
    %371 = vmatprep.subr.bf16.mxu0 0
    %372 = vmatpush1.bf16.msra.mxu0 %v350
    %373 = vmatprep.subr.bf16.mxu0 0
    %374 = vmatpush1.bf16.msra.mxu0 %v351
    %375 = vmatprep.subr.bf16.mxu0 0
    %376 = vmatpush1.bf16.msra.mxu0 %v352
    %377 = vmatprep.subr.bf16.mxu0 0
    %378 = vmatpush1.bf16.msra.mxu0 0
    %379 = vmatprep.subr.bf16.mxu0 0
    %380 = vmatpush1.bf16.msra.mxu0 0
    %381 = vmatprep.subr.bf16.mxu0 0
    %382 = vmatpush1.bf16.msra.mxu0 0
    %383 = vmatprep.subr.bf16.mxu0 0
    %384 = vmatpush1.bf16.msra.mxu0 0
    %385 = vmatprep.subr.bf16.mxu0 0
    %386 = vmatpush1.bf16.msra.mxu0 0
    %387 = vmatprep.subr.bf16.mxu0 0
    %388 = vmatpush1.bf16.msra.mxu0 0
    %389 = vmatprep.subr.bf16.mxu0 0
    %390 = vmatpush1.bf16.msra.mxu0 0
    %391 = vmatprep.subr.bf16.mxu0 0
    %392 = vmatpush1.bf16.msra.mxu0 0
    %393 = vmatprep.mubr.bf16.mxu0 0
    %394 = vmatmul.mubr.bf16.gmra.mrb[0].mxu0 %v289
    %v395 = vpop.f32.mrb[0].mxu0
    %v396 = vadd.f32 %v311, %v395
    %v397 = vpop.f32.mrb[0].mxu0
    %v398 = vpop.f32.mrb[0].mxu0
    %v399 = vadd.f32 %v311, %v398
    %v400 = vpop.f32.mrb[0].mxu0
    %401 = vdwg.mxu0
    %v402 = vpack.c.bf16 %v399, %v396
    %v403 = vld [vmem:[%s7] sm:$0x1]
    %vm404 = vcmp.gt.f32.partialorder %v403, 0.0
    %vm405 = vcmp.gt.bf16.partialorder %v402, 0
    %v406 = vsel %vm405, 0, %v402
    %v408 = vmul.bf16 %v406, 1069105081
    %v409 = vpow.bf16.pop %v408
    %v410 = vsub.bf16 %v409, 1065369472
    %v411 = vsel %vm405, %v402, %v410
    %v412 = vmax.bf16 %v402, 3248538016
    %v413 = vmin.bf16 %v412, 1073758208
    %v414 = vsel %vm404, 1, 0
    %v415 = vlaneseq
    %v416 = vshrl.u32 %v415, 7
    %v417 = vsub.s32 0, %v416
    %v418 = vrot.slane %v414, %v417
    %vm419 = vcmp.eq.s32.totalorder %v418, 1
    %vm420 = vmpackc.low %vm419, %vm419
    %v421 = vsel %vm420, 65537, 0
    %v422 = vlaneseq
    %v423 = vshrl.u32 %v422, 7
    %v424 = vsub.s32 0, %v423
    %v425 = vrot.slane %v421, %v424
    %vm426 = vcmp.ne.s16.totalorder %v425, 0
    %v427 = vsel %vm426, %v411, %v413
    %v428 = vunpack.c.l.bf16 %v427
    %v429 = vunpack.c.h.bf16 %v427
    %430 = vst [vmem:[#allocation10] sm:$0xff] %v428
    %431 = vst [vmem:[#allocation10 + $0x8] sm:$0xff] %v429
    // Predicated region
    $region50: #{tpu_custom_call.1} parent=1 // pred_check
      _
    $region51: #{tpu_custom_call.1} parent=1 // pred_check_branch
      %433 = sbr.rel (0) target = $region53
    $region52: #{tpu_custom_call.1} parent=1 // pred_region
      %s435 = ssub.s32 256, 256
      %436 = vsyncadd [#allocation4], %s435
      %s437 = sshll.u32 [#allocation10], 4
      %s438 = int_to_ptr.vmem [resolvable:$true] %s437
      %443 = dma.vmem_to_hbm [thread:$0]  %s438, 256, %s8, [#allocation4], 128, 128, 8
    $region53: #{tpu_custom_call.1} parent=1 // pred_fallthru
      _
    // Predicated region
    $region54: #{tpu_custom_call.1} parent=1 // pred_check
      _
    $region55: #{tpu_custom_call.1} parent=1 // pred_check_branch
      %445 = sbr.rel (0) target = $region57
    $region56: #{tpu_custom_call.1} parent=1 // pred_region
      %446 = dma.done [#allocation4], 256
    $region57: #{tpu_custom_call.1} parent=1 // pred_fallthru
      _
    %447 = vsyncpa [#allocation3], 1
    %448 = vsyncpa [#allocation6], 1
    %449 = vsyncpa [#allocation9], 1
    %450 = vsyncpa [#allocation4], 1

</llo_original>
